<compile_context>
chip_gen: v6e
topology: v6e:2x2x1
jax: 0.10.0
libtpu: 0.0.40
codegen_flags: <defaults>
</compile_context>

<pallas_src>
import jax
import jax.numpy as jnp
from jax.experimental import pallas as pl
from jax.experimental.pallas import tpu as pltpu

IN_F, HID_F, OUT_F = 256, 128, 14
TM_MAX = 4096                       # rows per batch tile (see VMEM accounting above)
VMEM_LIMIT_BYTES = 32 * 1024 * 1024  # explicit scoped-VMEM budget, safe on v5e/v6e/v7x


def _round_up(n, m):
    return ((n + m - 1) // m) * m


def _sublane(dtype):
    # Min second-to-last-dim tile for a dtype: f32 -> 8, bf16 -> 16, int8/fp8 -> 32.
    return max(8, 32 // jnp.dtype(dtype).itemsize)


def _mlp_kernel(x_ref, w1_ref, b1_ref, w2_ref, b2_ref, o_ref):
    # Both matmuls on the MXU with bf16 operands + f32 accumulation;
    # bias add + ReLU on the VPU.
    x = x_ref[...].astype(jnp.bfloat16)
    h = jnp.dot(x, w1_ref[...], preferred_element_type=jnp.float32) + b1_ref[...]
    h = jnp.maximum(h, 0.0)
    out = jnp.dot(h.astype(jnp.bfloat16), w2_ref[...],
                  preferred_element_type=jnp.float32) + b2_ref[...]
    o_ref[...] = out.astype(o_ref.dtype)


def avg_fc_forward(x, w1, b1, w2, b2, tm=TM_MAX):
    """x: (B, 256) -> (B, 14). Batch streamed over a 1-D grid; weights VMEM-resident."""
    B = x.shape[0]
    out_dtype = x.dtype
    if B == 0:
        return jnp.zeros((0, OUT_F), out_dtype)

    # Tile size: dtype-aware sublane multiple, no larger than needed / allowed.
    sub = _sublane(x.dtype)
    TM = min(_round_up(tm, sub), _round_up(B, sub))
    num_tiles = pl.cdiv(B, TM)   # ragged tail handled by Pallas partial-block masking

    # Weights VMEM-resident in bf16 (one-time tiny cast here); biases stay f32.
    w1b = w1.astype(jnp.bfloat16)
    w2b = w2.astype(jnp.bfloat16)
    b1f = b1.astype(jnp.float32).reshape(1, HID_F)
    b2f = b2.astype(jnp.float32).reshape(1, OUT_F)

    x_bytes = jnp.dtype(x.dtype).itemsize
    o_bytes = jnp.dtype(out_dtype).itemsize
    weight_bytes = (IN_F * HID_F + HID_F * OUT_F) * 2 + (HID_F + OUT_F) * 4
    cost = pl.CostEstimate(
        flops=2 * B * (IN_F * HID_F + HID_F * OUT_F),
        bytes_accessed=B * (IN_F * x_bytes + OUT_F * o_bytes) + weight_bytes,
        transcendentals=0,
    )

    out = pl.pallas_call(
        _mlp_kernel,
        out_shape=jax.ShapeDtypeStruct((B, OUT_F), out_dtype),
        grid=(num_tiles,),
        in_specs=[
            pl.BlockSpec((TM, IN_F), lambda i: (i, 0)),       # x: streamed per tile
            pl.BlockSpec((IN_F, HID_F), lambda i: (0, 0)),    # w1: resident
            pl.BlockSpec((1, HID_F), lambda i: (0, 0)),       # b1: resident
            pl.BlockSpec((HID_F, OUT_F), lambda i: (0, 0)),   # w2: resident
            pl.BlockSpec((1, OUT_F), lambda i: (0, 0)),       # b2: resident
        ],
        out_specs=pl.BlockSpec((TM, OUT_F), lambda i: (i, 0)),
        compiler_params=pltpu.CompilerParams(
            dimension_semantics=("parallel",),
            vmem_limit_bytes=VMEM_LIMIT_BYTES,
        ),
        cost_estimate=cost,
    )(x, w1b, b1f, w2b, b2f)

    return out


def init_params(key):
    """Deterministic init matching PyTorch nn.Linear default:
    U(-1/sqrt(fan_in), 1/sqrt(fan_in)) for both weight and bias.
    Weights stored as (in, out) so the kernel does plain x @ W + b."""
    k1, k2, k3, k4 = jax.random.split(key, 4)
    bnd1 = 1.0 / jnp.sqrt(jnp.float32(IN_F))
    bnd2 = 1.0 / jnp.sqrt(jnp.float32(HID_F))
    w1 = jax.random.uniform(k1, (IN_F, HID_F), jnp.float32, -bnd1, bnd1)
    b1 = jax.random.uniform(k2, (1, HID_F), jnp.float32, -bnd1, bnd1)
    w2 = jax.random.uniform(k3, (HID_F, OUT_F), jnp.float32, -bnd2, bnd2)
    b2 = jax.random.uniform(k4, (1, OUT_F), jnp.float32, -bnd2, bnd2)
    return w1, b1, w2, b2


if __name__ == "__main__":
    key = jax.random.PRNGKey(0)
    kx, kp = jax.random.split(key)

    # Small, deterministic example. B=37 deliberately not a multiple of 8
    # to exercise the ragged (partial last tile) path with no jnp.pad copy.
    B = 37
    x = jax.random.normal(kx, (B, IN_F), jnp.float32)
    w1, b1, w2, b2 = init_params(kp)

    out = jax.block_until_ready(avg_fc_forward(x, w1, b1, w2, b2))
    assert out.shape == (B, OUT_F)

    # Reference 1: same mixed precision (bf16 operands, f32 accumulation) — tight check.
    h = jnp.dot(x.astype(jnp.bfloat16), w1.astype(jnp.bfloat16),
                preferred_element_type=jnp.float32) + b1
    h = jnp.maximum(h, 0.0)
    ref_mixed = jnp.dot(h.astype(jnp.bfloat16), w2.astype(jnp.bfloat16),
                        preferred_element_type=jnp.float32) + b2
    assert jnp.allclose(out, ref_mixed, atol=2e-3, rtol=2e-3)

    # Reference 2: full f32 math — loose check that forward semantics are preserved
    # (bf16 MXU operands trade ~1e-3 absolute error for the roofline win).
    ref_f32 = jnp.maximum(x @ w1 + b1, 0.0) @ w2 + b2
    assert jnp.allclose(out, ref_f32, atol=5e-2, rtol=1e-2)

    print("KERNEL_OK")
</pallas_src>

<mosaic_0001>
module attributes {stable_mosaic.version = 11 : i64} {
  func.func @_mlp_kernel(%arg0: i32, %arg1: memref<40x256xf32, #tpu.memory_space<vmem>>, %arg2: memref<256x128xbf16, #tpu.memory_space<vmem>>, %arg3: memref<1x128xf32, #tpu.memory_space<vmem>>, %arg4: memref<128x14xbf16, #tpu.memory_space<vmem>>, %arg5: memref<1x14xf32, #tpu.memory_space<vmem>>, %arg6: memref<40x14xf32, #tpu.memory_space<vmem>>) attributes {dimension_semantics = [#tpu.dimension_semantics<parallel>], iteration_bounds = array<i64: 1>, scalar_prefetch = 0 : i64, scratch_operands = 0 : i64, tpu.core_type = #tpu.core_type<tc>, window_params = [{transform_indices = @transform_0, window_bounds = array<i64: 40, 256>}, {pipeline_mode = #tpu.pipeline_mode<synchronous>, transform_indices = @transform_1, window_bounds = array<i64: 256, 128>}, {pipeline_mode = #tpu.pipeline_mode<synchronous>, transform_indices = @transform_2, window_bounds = array<i64: 1, 128>}, {pipeline_mode = #tpu.pipeline_mode<synchronous>, transform_indices = @transform_3, window_bounds = array<i64: 128, 14>}, {pipeline_mode = #tpu.pipeline_mode<synchronous>, transform_indices = @transform_4, window_bounds = array<i64: 1, 14>}, {transform_indices = @transform_5, window_bounds = array<i64: 40, 14>}]} {
    %c0 = arith.constant 0 : index
    %c0_0 = arith.constant 0 : index
    %0 = vector.load %arg1[%c0, %c0_0] : memref<40x256xf32, #tpu.memory_space<vmem>>, vector<40x256xf32>
    %1 = arith.truncf %0 : vector<40x256xf32> to vector<40x256xbf16>
    %c0_1 = arith.constant 0 : index
    %c0_2 = arith.constant 0 : index
    %2 = vector.load %arg2[%c0_1, %c0_2] : memref<256x128xbf16, #tpu.memory_space<vmem>>, vector<256x128xbf16>
    %cst = arith.constant dense<0.000000e+00> : vector<40x128xf32>
    %3 = tpu.matmul %1, %2, %cst {dimension_numbers = #tpu.dot_dimension_numbers<[1], [0], [0], [1], [0, 0, 1, 1], [], []>} : vector<40x256xbf16>, vector<256x128xbf16>, vector<40x128xf32> -> vector<40x128xf32>
    %c0_3 = arith.constant 0 : index
    %c0_4 = arith.constant 0 : index
    %4 = vector.load %arg3[%c0_3, %c0_4] : memref<1x128xf32, #tpu.memory_space<vmem>>, vector<1x128xf32>
    %5 = vector.broadcast %4 : vector<1x128xf32> to vector<40x128xf32>
    %6 = arith.addf %3, %5 : vector<40x128xf32>
    %cst_5 = arith.constant 0.000000e+00 : f32
    %7 = vector.broadcast %cst_5 : f32 to vector<40x128xf32>
    %8 = arith.maximumf %6, %7 : vector<40x128xf32>
    %9 = arith.truncf %8 : vector<40x128xf32> to vector<40x128xbf16>
    %c0_6 = arith.constant 0 : index
    %c0_7 = arith.constant 0 : index
    %10 = vector.load %arg4[%c0_6, %c0_7] : memref<128x14xbf16, #tpu.memory_space<vmem>>, vector<128x14xbf16>
    %cst_8 = arith.constant dense<0.000000e+00> : vector<40x14xf32>
    %11 = tpu.matmul %9, %10, %cst_8 {dimension_numbers = #tpu.dot_dimension_numbers<[1], [0], [0], [1], [0, 0, 1, 1], [], []>} : vector<40x128xbf16>, vector<128x14xbf16>, vector<40x14xf32> -> vector<40x14xf32>
    %c0_9 = arith.constant 0 : index
    %c0_10 = arith.constant 0 : index
    %12 = vector.load %arg5[%c0_9, %c0_10] : memref<1x14xf32, #tpu.memory_space<vmem>>, vector<1x14xf32>
    %13 = vector.broadcast %12 : vector<1x14xf32> to vector<40x14xf32>
    %14 = arith.addf %11, %13 : vector<40x14xf32>
    %c0_11 = arith.constant 0 : index
    %c0_12 = arith.constant 0 : index
    %15 = vector.load %arg6[%c0_11, %c0_12] : memref<40x14xf32, #tpu.memory_space<vmem>>, vector<40x14xf32>
    tpu.vector_store %arg6[%c0_11, %c0_12], %14 {strides = array<i32>} : memref<40x14xf32, #tpu.memory_space<vmem>>, vector<40x14xf32>,
    return
  }
  func.func @transform_0(%arg0: i32) -> (i32, i32) {
    %c0_i32 = arith.constant 0 : i32
    %c0_i32_0 = arith.constant 0 : i32
    return %arg0, %c0_i32 : i32, i32
  }
  func.func @transform_1(%arg0: i32) -> (i32, i32) {
    %c0_i32 = arith.constant 0 : i32
    %c0_i32_0 = arith.constant 0 : i32
    %c0_i32_1 = arith.constant 0 : i32
    return %c0_i32, %c0_i32_0 : i32, i32
  }
  func.func @transform_2(%arg0: i32) -> (i32, i32) {
    %c0_i32 = arith.constant 0 : i32
    %c0_i32_0 = arith.constant 0 : i32
    %c0_i32_1 = arith.constant 0 : i32
    return %c0_i32, %c0_i32_0 : i32, i32
  }
  func.func @transform_3(%arg0: i32) -> (i32, i32) {
    %c0_i32 = arith.constant 0 : i32
    %c0_i32_0 = arith.constant 0 : i32
    %c0_i32_1 = arith.constant 0 : i32
    return %c0_i32, %c0_i32_0 : i32, i32
  }
  func.func @transform_4(%arg0: i32) -> (i32, i32) {
    %c0_i32 = arith.constant 0 : i32
    %c0_i32_0 = arith.constant 0 : i32
    %c0_i32_1 = arith.constant 0 : i32
    return %c0_i32, %c0_i32_0 : i32, i32
  }
  func.func @transform_5(%arg0: i32) -> (i32, i32) {
    %c0_i32 = arith.constant 0 : i32
    %c0_i32_0 = arith.constant 0 : i32
    return %arg0, %c0_i32 : i32, i32
  }
}

</mosaic_0001>

<llo_original>
// kernel: tpu_custom_call.1
$region0: #{tpu_custom_call.1}
  #allocation0 [shape = 'u32[]', space=smem, size = 0x4, offset = 0x4, fixed_abs, tag = 'smem constant byte address 0x4 - core index']
  #allocation1 [shape = 'u32[144,128]{1,0:T(1,128)}', space=vmem, size = 0x12000, scoped, tag = 'internal scratch']
  %s0 = inlined_call_operand.hbm [shape: f32[37,256], index: 0, kind: input, shape index: {}]
  %s1 = inlined_call_operand.hbm [shape: bf16[256,128], index: 1, kind: input, shape index: {}]
  %s2 = inlined_call_operand.vmem [shape: f32[1,128], index: 2, kind: input, shape index: {}]
  %s3 = inlined_call_operand.vmem [shape: bf16[128,14], index: 3, kind: input, shape index: {}]
  %s4 = inlined_call_operand.vmem [shape: f32[1,14], index: 4, kind: input, shape index: {}]
  %s5 = inlined_call_operand.vmem [shape: f32[37,14], index: 5, kind: output, shape index: {}]
  %s6 = sld [smem:[#allocation0]]
  $region38: #{tpu_custom_call.1} parent=0
    _
  %s8 = ssub.s32 1, %s6
  %s9 = scalar_select 0, %s8, %s6
  $region1: #{tpu_custom_call.1} parent=0
    #allocation2 [shape = 'u8[40960]{0}', space=vmem, size = 0xa000, scoped, tag = 'input window, operand 0, single buffered']
    #allocation3 [shape = 's32[1]{0}', space=sflag, size = 0x4, scoped, tag = 'scoped memory for tpu_custom_call.1']
    #allocation4 [shape = 'u8[65536]{0}', space=vmem, size = 0x10000, scoped, tag = 'input window, operand 1, single buffered']
    #allocation5 [shape = 's32[1]{0}', space=sflag, size = 0x4, scoped, tag = 'scoped memory for tpu_custom_call.1']
    %10 = vsyncpa [#allocation3], 0
    %11 = vsyncpa [#allocation5], 0
    // Predicated region
    $region2: #{tpu_custom_call.1} parent=1 // pred_check
      _
    $region3: #{tpu_custom_call.1} parent=1 // pred_check_branch
      %13 = sbr.rel (0) target = $region5
    $region4: #{tpu_custom_call.1} parent=1 // pred_region
      %s15 = ssub.s32 1280, 1280
      %16 = vsyncadd [#allocation3], %s15
      %s17 = sshll.u32 [#allocation2], 4
      %s18 = int_to_ptr.vmem [resolvable:$true] %s17
      %23 = dma.hbm_to_vmem [thread:$0]  %s0, 1280, %s18, [#allocation3], 256, 256, 16
    $region5: #{tpu_custom_call.1} parent=1 // pred_fallthru
      _
    // Predicated region
    $region6: #{tpu_custom_call.1} parent=1 // pred_check
      _
    $region7: #{tpu_custom_call.1} parent=1 // pred_check_branch
      %25 = sbr.rel (0) target = $region9
    $region8: #{tpu_custom_call.1} parent=1 // pred_region
      %s27 = ssub.s32 2048, 2048
      %28 = vsyncadd [#allocation5], %s27
      %s29 = sshll.u32 [#allocation4], 4
      %s30 = int_to_ptr.vmem [resolvable:$true] %s29
      %35 = dma.hbm_to_vmem [thread:$0]  %s1, 2048, %s30, [#allocation5], 64, 64, 4
    $region9: #{tpu_custom_call.1} parent=1 // pred_fallthru
      _
    // Predicated region
    $region10: #{tpu_custom_call.1} parent=1 // pred_check
      _
    $region11: #{tpu_custom_call.1} parent=1 // pred_check_branch
      %37 = sbr.rel (0) target = $region13
    $region12: #{tpu_custom_call.1} parent=1 // pred_region
      _
    $region13: #{tpu_custom_call.1} parent=1 // pred_fallthru
      _
    // Predicated region
    $region14: #{tpu_custom_call.1} parent=1 // pred_check
      _
    $region15: #{tpu_custom_call.1} parent=1 // pred_check_branch
      %39 = sbr.rel (0) target = $region17
    $region16: #{tpu_custom_call.1} parent=1 // pred_region
      _
    $region17: #{tpu_custom_call.1} parent=1 // pred_fallthru
      _
    // Predicated region
    $region18: #{tpu_custom_call.1} parent=1 // pred_check
      _
    $region19: #{tpu_custom_call.1} parent=1 // pred_check_branch
      %41 = sbr.rel (0) target = $region21
    $region20: #{tpu_custom_call.1} parent=1 // pred_region
      _
    $region21: #{tpu_custom_call.1} parent=1 // pred_fallthru
      _
    // Predicated region
    $region22: #{tpu_custom_call.1} parent=1 // pred_check
      _
    $region23: #{tpu_custom_call.1} parent=1 // pred_check_branch
      %43 = sbr.rel (0) target = $region25
    $region24: #{tpu_custom_call.1} parent=1 // pred_region
      %44 = dma.done [#allocation3], 1280
    $region25: #{tpu_custom_call.1} parent=1 // pred_fallthru
      _
    // Predicated region
    $region26: #{tpu_custom_call.1} parent=1 // pred_check
      _
    $region27: #{tpu_custom_call.1} parent=1 // pred_check_branch
      %46 = sbr.rel (0) target = $region29
    $region28: #{tpu_custom_call.1} parent=1 // pred_region
      %47 = dma.done [#allocation5], 2048
    $region29: #{tpu_custom_call.1} parent=1 // pred_fallthru
      _
    %v49 = vld [vmem:[#allocation2] sm:$0xff]
    %v50 = vld [vmem:[#allocation2 + $0x8] sm:$0xff]
    %v51 = vld [vmem:[#allocation2 + $0x10] sm:$0xff]
    %v52 = vld [vmem:[#allocation2 + $0x18] sm:$0xff]
    %v53 = vld [vmem:[#allocation2 + $0x20] sm:$0xff]
    %v54 = vld [vmem:[#allocation2 + $0x28] sm:$0xff]
    %v55 = vld [vmem:[#allocation2 + $0x30] sm:$0xff]
    %v56 = vld [vmem:[#allocation2 + $0x38] sm:$0xff]
    %v57 = vld [vmem:[#allocation2 + $0x40] sm:$0xff]
    %v58 = vld [vmem:[#allocation2 + $0x48] sm:$0xff]
    %v59 = vpack.c.bf16 %v51, %v49
    %v60 = vpack.c.bf16 %v52, %v50
    %v61 = vpack.c.bf16 %v55, %v53
    %v62 = vpack.c.bf16 %v56, %v54
    %v63 = vpack.c.bf16 %v57, %v57
    %v64 = vpack.c.bf16 %v58, %v58
    %v65 = vld [vmem:[#allocation4] sm:$0xf]
    %v66 = vld [vmem:[#allocation4 + $0x4] sm:$0xf]
    %v67 = vld [vmem:[#allocation4 + $0x8] sm:$0xf]
    %v68 = vld [vmem:[#allocation4 + $0xc] sm:$0xf]
    %v69 = vld [vmem:[#allocation4 + $0x10] sm:$0xf]
    %v70 = vld [vmem:[#allocation4 + $0x14] sm:$0xf]
    %v71 = vld [vmem:[#allocation4 + $0x18] sm:$0xf]
    %v72 = vld [vmem:[#allocation4 + $0x1c] sm:$0xf]
    %v73 = vld [vmem:[#allocation4 + $0x20] sm:$0xf]
    %v74 = vld [vmem:[#allocation4 + $0x24] sm:$0xf]
    %v75 = vld [vmem:[#allocation4 + $0x28] sm:$0xf]
    %v76 = vld [vmem:[#allocation4 + $0x2c] sm:$0xf]
    %v77 = vld [vmem:[#allocation4 + $0x30] sm:$0xf]
    %v78 = vld [vmem:[#allocation4 + $0x34] sm:$0xf]
    %v79 = vld [vmem:[#allocation4 + $0x38] sm:$0xf]
    %v80 = vld [vmem:[#allocation4 + $0x3c] sm:$0xf]
    %v81 = vld [vmem:[#allocation4 + $0x40] sm:$0xf]
    %v82 = vld [vmem:[#allocation4 + $0x44] sm:$0xf]
    %v83 = vld [vmem:[#allocation4 + $0x48] sm:$0xf]
    %v84 = vld [vmem:[#allocation4 + $0x4c] sm:$0xf]
    %v85 = vld [vmem:[#allocation4 + $0x50] sm:$0xf]
    %v86 = vld [vmem:[#allocation4 + $0x54] sm:$0xf]
    %v87 = vld [vmem:[#allocation4 + $0x58] sm:$0xf]
    %v88 = vld [vmem:[#allocation4 + $0x5c] sm:$0xf]
    %v89 = vld [vmem:[#allocation4 + $0x60] sm:$0xf]
    %v90 = vld [vmem:[#allocation4 + $0x64] sm:$0xf]
    %v91 = vld [vmem:[#allocation4 + $0x68] sm:$0xf]
    %v92 = vld [vmem:[#allocation4 + $0x6c] sm:$0xf]
    %v93 = vld [vmem:[#allocation4 + $0x70] sm:$0xf]
    %v94 = vld [vmem:[#allocation4 + $0x74] sm:$0xf]
    %v95 = vld [vmem:[#allocation4 + $0x78] sm:$0xf]
    %v96 = vld [vmem:[#allocation4 + $0x7c] sm:$0xf]
    %v97 = vld [vmem:[%s2] sm:$0x1]
    %v99 = vlaneseq
    %v100 = vshrl.u32 %v99, 7
    %v101 = vsub.s32 0, %v100
    %v102 = vrot.slane %v97, %v101
    %v136 = vunpack.c.l.b16 %v65
    %v137 = vunpack.c.l.b16 %v66
    %v138 = vunpack.c.l.b16 %v67
    %v139 = vunpack.c.l.b16 %v68
    %v140 = vunpack.c.l.b16 %v69
    %v141 = vunpack.c.l.b16 %v70
    %v142 = vunpack.c.l.b16 %v71
    %v143 = vunpack.c.l.b16 %v72
    %v144 = vunpack.c.l.b16 %v73
    %v145 = vunpack.c.l.b16 %v74
    %v146 = vunpack.c.l.b16 %v75
    %v147 = vunpack.c.l.b16 %v76
    %v148 = vunpack.c.l.b16 %v77
    %v149 = vunpack.c.l.b16 %v78
    %v150 = vunpack.c.l.b16 %v79
    %v151 = vunpack.c.l.b16 %v80
    %v152 = vunpack.c.l.b16 %v81
    %v153 = vunpack.c.l.b16 %v82
    %v154 = vunpack.c.l.b16 %v83
    %v155 = vunpack.c.l.b16 %v84
    %v156 = vunpack.c.l.b16 %v85
    %v157 = vunpack.c.l.b16 %v86
    %v158 = vunpack.c.l.b16 %v87
    %v159 = vunpack.c.l.b16 %v88
    %v160 = vunpack.c.l.b16 %v89
    %v161 = vunpack.c.l.b16 %v90
    %v162 = vunpack.c.l.b16 %v91
    %v163 = vunpack.c.l.b16 %v92
    %v164 = vunpack.c.l.b16 %v93
    %v165 = vunpack.c.l.b16 %v94
    %v166 = vunpack.c.l.b16 %v95
    %v167 = vunpack.c.l.b16 %v96
    %v168 = vpack.c.b16 %v137, %v136
    %v169 = vpack.c.b16 %v139, %v138
    %v170 = vpack.c.b16 %v141, %v140
    %v171 = vpack.c.b16 %v143, %v142
    %v172 = vpack.c.b16 %v145, %v144
    %v173 = vpack.c.b16 %v147, %v146
    %v174 = vpack.c.b16 %v149, %v148
    %v175 = vpack.c.b16 %v151, %v150
    %v176 = vpack.c.b16 %v153, %v152
    %v177 = vpack.c.b16 %v155, %v154
    %v178 = vpack.c.b16 %v157, %v156
    %v179 = vpack.c.b16 %v159, %v158
    %v180 = vpack.c.b16 %v161, %v160
    %v181 = vpack.c.b16 %v163, %v162
    %v182 = vpack.c.b16 %v165, %v164
    %v183 = vpack.c.b16 %v167, %v166
    %200 = vmatprep.subr.bf16.mxu0 0
    %201 = vmatpush1.bf16.msra.mxu0 %v175
    %202 = vmatprep.subr.bf16.mxu0 0
    %203 = vmatpush1.bf16.msra.mxu0 %v174
    %204 = vmatprep.subr.bf16.mxu0 0
    %205 = vmatpush1.bf16.msra.mxu0 %v173
    %206 = vmatprep.subr.bf16.mxu0 0
    %207 = vmatpush1.bf16.msra.mxu0 %v172
    %208 = vmatprep.subr.bf16.mxu0 0
    %209 = vmatpush1.bf16.msra.mxu0 %v171
    %210 = vmatprep.subr.bf16.mxu0 0
    %211 = vmatpush1.bf16.msra.mxu0 %v170
    %212 = vmatprep.subr.bf16.mxu0 0
    %213 = vmatpush1.bf16.msra.mxu0 %v169
    %214 = vmatprep.subr.bf16.mxu0 0
    %215 = vmatpush1.bf16.msra.mxu0 %v168
    %216 = vmatprep.subr.bf16.mxu0 0
    %217 = vmatpush2.bf16.msra.mxu0 %v183
    %218 = vmatprep.subr.bf16.mxu0 0
    %219 = vmatpush2.bf16.msra.mxu0 %v182
    %220 = vmatprep.subr.bf16.mxu0 0
    %221 = vmatpush2.bf16.msra.mxu0 %v181
    %222 = vmatprep.subr.bf16.mxu0 0
    %223 = vmatpush2.bf16.msra.mxu0 %v180
    %224 = vmatprep.subr.bf16.mxu0 0
    %225 = vmatpush2.bf16.msra.mxu0 %v179
    %226 = vmatprep.subr.bf16.mxu0 0
    %227 = vmatpush2.bf16.msra.mxu0 %v178
    %228 = vmatprep.subr.bf16.mxu0 0
    %229 = vmatpush2.bf16.msra.mxu0 %v177
    %230 = vmatprep.subr.bf16.mxu0 0
    %231 = vmatpush2.bf16.msra.mxu0 %v176
    %232 = vmatprep.mubr.bf16.mxu0 %v60
    %233 = vmatmul.mubr.bf16.gmra.mxu0 %v59
    %v234 = vpop.f32.mrf.mxu0
    %v235 = vadd.f32 %v102, %v234
    %v236 = vpop.f32.mrf.mxu0
    %v237 = vpop.f32.mrf.mxu0
    %v238 = vadd.f32 %v102, %v237
    %v239 = vpop.f32.mrf.mxu0
    %240 = vmatprep.mubr.bf16.mxu0 %v62
    %241 = vmatmul.mubr.bf16.gmra.mxu0 %v61
    %v242 = vpop.f32.mrf.mxu0
    %v243 = vadd.f32 %v102, %v242
    %v244 = vpop.f32.mrf.mxu0
    %v245 = vpop.f32.mrf.mxu0
    %v246 = vadd.f32 %v102, %v245
    %v247 = vpop.f32.mrf.mxu0
    %248 = vmatprep.mubr.bf16.mxu0 %v64
    %249 = vmatmul.mubr.bf16.gmra.mxu0 %v63
    %v250 = vpop.f32.mrf.mxu0
    %v251 = vadd.f32 %v102, %v250
    %v252 = vpop.f32.mrf.mxu0
    %v253 = vpop.f32.mrf.mxu0
    %v254 = vpop.f32.mrf.mxu0
    %255 = vdwg.mxu0
    %v256 = vmax.f32 %v235, 0.0
    %v257 = vmax.f32 %v238, 0.0
    %v258 = vmax.f32 %v243, 0.0
    %v259 = vmax.f32 %v246, 0.0
    %v260 = vmax.f32 %v251, 0.0
    %v261 = vpack.c.bf16 %v257, %v256
    %v262 = vpack.c.bf16 %v259, %v258
    %v263 = vpack.c.bf16 %v260, %v260
    %v264 = vld [vmem:[%s3] sm:$0xf]
    %v265 = vld [vmem:[%s3 + $0x4] sm:$0xf]
    %v266 = vld [vmem:[%s3 + $0x8] sm:$0xf]
    %v267 = vld [vmem:[%s3 + $0xc] sm:$0xf]
    %v268 = vld [vmem:[%s3 + $0x10] sm:$0xf]
    %v269 = vld [vmem:[%s3 + $0x14] sm:$0xf]
    %v270 = vld [vmem:[%s3 + $0x18] sm:$0xf]
    %v271 = vld [vmem:[%s3 + $0x1c] sm:$0xf]
    %v272 = vld [vmem:[%s3 + $0x20] sm:$0xf]
    %v273 = vld [vmem:[%s3 + $0x24] sm:$0xf]
    %v274 = vld [vmem:[%s3 + $0x28] sm:$0xf]
    %v275 = vld [vmem:[%s3 + $0x2c] sm:$0xf]
    %v276 = vld [vmem:[%s3 + $0x30] sm:$0xf]
    %v277 = vld [vmem:[%s3 + $0x34] sm:$0xf]
    %v278 = vld [vmem:[%s3 + $0x38] sm:$0xf]
    %v279 = vld [vmem:[%s3 + $0x3c] sm:$0xf]
    %v280 = vld [vmem:[%s4] sm:$0x1]
    %v282 = vlaneseq
    %v283 = vshrl.u32 %v282, 7
    %v284 = vsub.s32 0, %v283
    %v285 = vrot.slane %v280, %v284
    %v303 = vunpack.c.l.b16 %v264
    %v304 = vunpack.c.l.b16 %v265
    %v305 = vunpack.c.l.b16 %v266
    %v306 = vunpack.c.l.b16 %v267
    %v307 = vunpack.c.l.b16 %v268
    %v308 = vunpack.c.l.b16 %v269
    %v309 = vunpack.c.l.b16 %v270
    %v310 = vunpack.c.l.b16 %v271
    %v311 = vunpack.c.l.b16 %v272
    %v312 = vunpack.c.l.b16 %v273
    %v313 = vunpack.c.l.b16 %v274
    %v314 = vunpack.c.l.b16 %v275
    %v315 = vunpack.c.l.b16 %v276
    %v316 = vunpack.c.l.b16 %v277
    %v317 = vunpack.c.l.b16 %v278
    %v318 = vunpack.c.l.b16 %v279
    %v319 = vpack.c.b16 %v304, %v303
    %v320 = vpack.c.b16 %v306, %v305
    %v321 = vpack.c.b16 %v308, %v307
    %v322 = vpack.c.b16 %v310, %v309
    %v323 = vpack.c.b16 %v312, %v311
    %v324 = vpack.c.b16 %v314, %v313
    %v325 = vpack.c.b16 %v316, %v315
    %v326 = vpack.c.b16 %v318, %v317
    %335 = vmatprep.subr.bf16.mxu0 0
    %336 = vmatpush1.bf16.msra.mxu0 %v326
    %337 = vmatprep.subr.bf16.mxu0 0
    %338 = vmatpush1.bf16.msra.mxu0 %v325
    %339 = vmatprep.subr.bf16.mxu0 0
    %340 = vmatpush1.bf16.msra.mxu0 %v324
    %341 = vmatprep.subr.bf16.mxu0 0
    %342 = vmatpush1.bf16.msra.mxu0 %v323
    %343 = vmatprep.subr.bf16.mxu0 0
    %344 = vmatpush1.bf16.msra.mxu0 %v322
    %345 = vmatprep.subr.bf16.mxu0 0
    %346 = vmatpush1.bf16.msra.mxu0 %v321
    %347 = vmatprep.subr.bf16.mxu0 0
    %348 = vmatpush1.bf16.msra.mxu0 %v320
    %349 = vmatprep.subr.bf16.mxu0 0
    %350 = vmatpush1.bf16.msra.mxu0 %v319
    %351 = vmatprep.subr.bf16.mxu0 0
    %352 = vmatpush2.bf16.msra.mxu0 0
    %353 = vmatprep.subr.bf16.mxu0 0
    %354 = vmatpush2.bf16.msra.mxu0 0
    %355 = vmatprep.subr.bf16.mxu0 0
    %356 = vmatpush2.bf16.msra.mxu0 0
    %357 = vmatprep.subr.bf16.mxu0 0
    %358 = vmatpush2.bf16.msra.mxu0 0
    %359 = vmatprep.subr.bf16.mxu0 0
    %360 = vmatpush2.bf16.msra.mxu0 0
    %361 = vmatprep.subr.bf16.mxu0 0
    %362 = vmatpush2.bf16.msra.mxu0 0
    %363 = vmatprep.subr.bf16.mxu0 0
    %364 = vmatpush2.bf16.msra.mxu0 0
    %365 = vmatprep.subr.bf16.mxu0 0
    %366 = vmatpush2.bf16.msra.mxu0 0
    %367 = vmatprep.mubr.bf16.mxu0 0
    %368 = vmatmul.mubr.bf16.gmra.mxu0 %v261
    %v369 = vpop.f32.mrf.mxu0
    %v370 = vadd.f32 %v285, %v369
    %v371 = vpop.f32.mrf.mxu0
    %v372 = vpop.f32.mrf.mxu0
    %v373 = vadd.f32 %v285, %v372
    %v374 = vpop.f32.mrf.mxu0
    %375 = vmatprep.mubr.bf16.mxu0 0
    %376 = vmatmul.mubr.bf16.gmra.mxu0 %v262
    %v377 = vpop.f32.mrf.mxu0
    %v378 = vadd.f32 %v285, %v377
    %v379 = vpop.f32.mrf.mxu0
    %v380 = vpop.f32.mrf.mxu0
    %v381 = vadd.f32 %v285, %v380
    %v382 = vpop.f32.mrf.mxu0
    %383 = vmatprep.mubr.bf16.mxu0 0
    %384 = vmatmul.mubr.bf16.gmra.mxu0 %v263
    %v385 = vpop.f32.mrf.mxu0
    %v386 = vadd.f32 %v285, %v385
    %v387 = vpop.f32.mrf.mxu0
    %v388 = vpop.f32.mrf.mxu0
    %v389 = vpop.f32.mrf.mxu0
    %390 = vdwg.mxu0
    %vm391 = vcmask 113664
    %392 = vst.msk [vmem:[%s5] sm:$0xff] %vm391, %v370
    %393 = vst.msk [vmem:[%s5 + $0x8] sm:$0xff] %vm391, %v373
    %394 = vst.msk [vmem:[%s5 + $0x10] sm:$0xff] %vm391, %v378
    %395 = vst.msk [vmem:[%s5 + $0x18] sm:$0xff] %vm391, %v381
    %396 = vst.msk [vmem:[%s5 + $0x20] sm:$0xff] %vm391, %v386
    // Predicated region
    $region30: #{tpu_custom_call.1} parent=1 // pred_check
      _
    $region31: #{tpu_custom_call.1} parent=1 // pred_check_branch
      %398 = sbr.rel (0) target = $region33
    $region32: #{tpu_custom_call.1} parent=1 // pred_region
      _
    $region33: #{tpu_custom_call.1} parent=1 // pred_fallthru
      _
    // Predicated region
    $region34: #{tpu_custom_call.1} parent=1 // pred_check
      _
    $region35: #{tpu_custom_call.1} parent=1 // pred_check_branch
      %400 = sbr.rel (0) target = $region37
    $region36: #{tpu_custom_call.1} parent=1 // pred_region
      _
    $region37: #{tpu_custom_call.1} parent=1 // pred_fallthru
      _
    %401 = vsyncpa [#allocation3], 1
    %402 = vsyncpa [#allocation5], 1

</llo_original>
